<compile_context>
chip_gen: v7x
topology: tpu7x:2x2x1
jax: 0.10.0
libtpu: 0.0.40
codegen_flags: <defaults>
</compile_context>

<pallas_src>
import functools

import jax
import jax.numpy as jnp
from jax.experimental import pallas as pl
from jax.experimental.pallas import tpu as pltpu


# ---------------------------------------------------------------------------
# Shared math
# ---------------------------------------------------------------------------

def _activation(name, x):
    if name == "tanh":
        return jnp.tanh(x)
    elif name == "elu":
        # Masked-input pattern so the unselected expm1 branch never sees large
        # positive values (avoids inf/NaN propagation through jnp.where).
        return jnp.where(x > 0, x, jnp.expm1(jnp.minimum(x, 0.0)))
    else:
        raise ValueError(f"Unsupported activation function: {name}")


def _sigmoid(z, approx):
    # sigmoid(x) = 1 / (1 + exp(-x)); with approx=True the reciprocal lowers
    # to the EUP vrcp slot instead of a full-precision VALU divide sequence.
    return pl.reciprocal(1.0 + jnp.exp(-z), approx=approx)


def _lstm_step(x, h_prev, c_prev, wx, wh, b, *, hidden_size,
               cell_activation, hidden_activation, approx_sigmoid,
               matmul_dtype):
    """One LSTM-cell update in f32; returns (h, c) as f32 arrays."""
    H = hidden_size
    xm, hm, wxm, whm = x, h_prev, wx, wh
    if matmul_dtype is not None:
        xm = xm.astype(matmul_dtype)
        hm = hm.astype(matmul_dtype)
        wxm = wxm.astype(matmul_dtype)
        whm = whm.astype(matmul_dtype)

    # Single fused gate pre-activation: z = x @ Wx + h_prev @ Wh + b.
    z = jnp.dot(xm, wxm, preferred_element_type=jnp.float32)
    z = z + jnp.dot(hm, whm, preferred_element_type=jnp.float32)
    z = z + b.astype(jnp.float32)

    # Static lane slices into the four gates (gate order: i | f | o | g).
    i = _sigmoid(z[:, 0 * H:1 * H], approx_sigmoid)
    f = _sigmoid(z[:, 1 * H:2 * H], approx_sigmoid)
    o = _sigmoid(z[:, 2 * H:3 * H], approx_sigmoid)
    g = _activation(cell_activation, z[:, 3 * H:4 * H])

    c = f * c_prev.astype(jnp.float32) + i * g
    h = o * _activation(hidden_activation, c)
    return h, c


# ---------------------------------------------------------------------------
# Single-step cell kernel (matches CustomLSTMCell.forward exactly)
# ---------------------------------------------------------------------------

def lstm_cell_kernel(x_ref, h_prev_ref, wx_ref, wh_ref, b_ref, c_prev_ref,
                     h_out_ref, c_out_ref, *, hidden_size, cell_activation,
                     hidden_activation, approx_sigmoid, matmul_dtype):
    h, c = _lstm_step(
        x_ref[...], h_prev_ref[...], c_prev_ref[...],
        wx_ref[...], wh_ref[...], b_ref[...],
        hidden_size=hidden_size, cell_activation=cell_activation,
        hidden_activation=hidden_activation, approx_sigmoid=approx_sigmoid,
        matmul_dtype=matmul_dtype)
    # Two direct stores; no concat, no wrapper-side slicing.
    h_out_ref[...] = h.astype(h_out_ref.dtype)
    c_out_ref[...] = c.astype(c_out_ref.dtype)


# ---------------------------------------------------------------------------
# In-kernel time loop (sequence) kernel: T grid axis, VMEM-resident weights,
# h/c carried in f32 VMEM scratch.
# ---------------------------------------------------------------------------

def lstm_seq_kernel(x_ref, h0_ref, c0_ref, wx_ref, wh_ref, b_ref,
                    h_seq_ref, h_fin_ref, c_fin_ref,
                    h_sc, c_sc, *, hidden_size, cell_activation,
                    hidden_activation, approx_sigmoid, matmul_dtype):
    t = pl.program_id(0)

    @pl.when(t == 0)
    def _():
        h_sc[...] = h0_ref[...].astype(jnp.float32)
        c_sc[...] = c0_ref[...].astype(jnp.float32)

    h, c = _lstm_step(
        x_ref[...], h_sc[...], c_sc[...],
        wx_ref[...], wh_ref[...], b_ref[...],
        hidden_size=hidden_size, cell_activation=cell_activation,
        hidden_activation=hidden_activation, approx_sigmoid=approx_sigmoid,
        matmul_dtype=matmul_dtype)

    # Carry state in f32 scratch (no per-step HBM round trip, no bf16
    # rounding accumulation over long sequences).
    h_sc[...] = h
    c_sc[...] = c

    # Per-step hidden output (lane-dense store of the full block).
    h_seq_ref[...] = h.astype(h_seq_ref.dtype)

    @pl.when(t == pl.num_programs(0) - 1)
    def _():
        h_fin_ref[...] = h.astype(h_fin_ref.dtype)
        c_fin_ref[...] = c.astype(c_fin_ref.dtype)


# ---------------------------------------------------------------------------
# Host-side wrappers
# ---------------------------------------------------------------------------

def _fuse_params(params, input_size, hidden_size):
    """Fuse the four per-gate linears into (D,4H)/(H,4H) weights + (1,4H) bias."""
    gates = ("i", "f", "o", "g")
    Wx = jnp.concatenate([params[f"W_{g}"][:input_size] for g in gates], axis=1)
    Wh = jnp.concatenate([params[f"W_{g}"][input_size:] for g in gates], axis=1)
    b = jnp.concatenate([params[f"b_{g}"] for g in gates], axis=0)
    return Wx, Wh, b.reshape(1, 4 * hidden_size)


def _pick_batch_tile(B, cap=256):
    if B <= cap:
        return B
    for t in range(cap, 0, -1):
        if B % t == 0:
            return t
    return B


def _vmem_limit_bytes(*arrays):
    # 2x headroom for BlockSpec double-buffering plus f32 gate temporaries,
    # clamped to [32 MiB, 64 MiB] so the limit is legal on every generation
    # (v7x physical VMEM is 64 MiB).
    needed = sum(int(a.size) * a.dtype.itemsize for a in arrays)
    return int(min(64 * 1024 * 1024, max(32 * 1024 * 1024, 4 * needed)))


def custom_lstm_cell(x, hidden, params, cell_activation="tanh",
                     hidden_activation="tanh", batch_tile=None,
                     approx_sigmoid=False, matmul_dtype=None):
    """Pallas implementation of CustomLSTMCell.forward (one step).

    x:       (B, input_size)
    hidden:  (h_prev, c_prev), each (B, hidden_size)
    params:  dict with W_i/W_f/W_o/W_g of shape (input_size+hidden, hidden)
             (already transposed vs. torch nn.Linear) and b_* of (hidden,)
    returns: (h, c), each (B, hidden_size)
    """
    h_prev, c_prev = hidden
    B, input_size = x.shape
    H = h_prev.shape[1]
    dtype = x.dtype

    Wx, Wh, b_all = _fuse_params(params, input_size, H)

    if batch_tile is None:
        batch_tile = _pick_batch_tile(B)
    assert B % batch_tile == 0, "batch must be divisible by the batch tile"
    grid = (B // batch_tile,)

    kernel = functools.partial(
        lstm_cell_kernel, hidden_size=H, cell_activation=cell_activation,
        hidden_activation=hidden_activation, approx_sigmoid=approx_sigmoid,
        matmul_dtype=matmul_dtype)

    cost = pl.CostEstimate(
        flops=2 * B * (input_size + H) * 4 * H,
        transcendentals=5 * B * H,
        bytes_accessed=int(x.nbytes + h_prev.nbytes + c_prev.nbytes
                           + Wx.nbytes + Wh.nbytes + b_all.nbytes
                           + 2 * B * H * x.dtype.itemsize))

    h, c = pl.pallas_call(
        kernel,
        out_shape=(jax.ShapeDtypeStruct((B, H), dtype),
                   jax.ShapeDtypeStruct((B, H), dtype)),
        grid=grid,
        in_specs=[
            pl.BlockSpec((batch_tile, input_size), lambda b: (b, 0)),  # x
            pl.BlockSpec((batch_tile, H), lambda b: (b, 0)),           # h_prev
            pl.BlockSpec((input_size, 4 * H), lambda b: (0, 0)),       # Wx
            pl.BlockSpec((H, 4 * H), lambda b: (0, 0)),                # Wh
            pl.BlockSpec((1, 4 * H), lambda b: (0, 0)),                # b_all
            pl.BlockSpec((batch_tile, H), lambda b: (b, 0)),           # c_prev
        ],
        out_specs=[
            pl.BlockSpec((batch_tile, H), lambda b: (b, 0)),           # h
            pl.BlockSpec((batch_tile, H), lambda b: (b, 0)),           # c
        ],
        compiler_params=pltpu.CompilerParams(
            dimension_semantics=("parallel",),
            vmem_limit_bytes=_vmem_limit_bytes(x, h_prev, c_prev, Wx, Wh, b_all),
        ),
        cost_estimate=cost,
    )(x, h_prev, Wx, Wh, b_all, c_prev)
    return h, c


def custom_lstm_sequence(xs, hidden, params, cell_activation="tanh",
                         hidden_activation="tanh", approx_sigmoid=False,
                         matmul_dtype=None):
    """Run the cell over a (T, B, D) sequence with the time loop in-kernel.

    Weights stay VMEM-resident across all T steps (constant index_maps) and
    h/c are carried in f32 VMEM scratch.  Returns (h_seq, (h_T, c_T)).
    """
    h0, c0 = hidden
    T, B, D = xs.shape
    H = h0.shape[1]
    dtype = xs.dtype

    Wx, Wh, b_all = _fuse_params(params, D, H)

    kernel = functools.partial(
        lstm_seq_kernel, hidden_size=H, cell_activation=cell_activation,
        hidden_activation=hidden_activation, approx_sigmoid=approx_sigmoid,
        matmul_dtype=matmul_dtype)

    cost = pl.CostEstimate(
        flops=2 * T * B * (D + H) * 4 * H,
        transcendentals=5 * T * B * H,
        bytes_accessed=int(xs.nbytes + h0.nbytes + c0.nbytes
                           + Wx.nbytes + Wh.nbytes + b_all.nbytes
                           + (T + 2) * B * H * xs.dtype.itemsize))

    h_seq, h_T, c_T = pl.pallas_call(
        kernel,
        out_shape=(jax.ShapeDtypeStruct((T, B, H), dtype),
                   jax.ShapeDtypeStruct((B, H), dtype),
                   jax.ShapeDtypeStruct((B, H), dtype)),
        grid=(T,),
        in_specs=[
            pl.BlockSpec((None, B, D), lambda t: (t, 0, 0)),   # xs (step slice)
            pl.BlockSpec((B, H), lambda t: (0, 0)),            # h0
            pl.BlockSpec((B, H), lambda t: (0, 0)),            # c0
            pl.BlockSpec((D, 4 * H), lambda t: (0, 0)),        # Wx (VMEM-resident)
            pl.BlockSpec((H, 4 * H), lambda t: (0, 0)),        # Wh (VMEM-resident)
            pl.BlockSpec((1, 4 * H), lambda t: (0, 0)),        # b_all
        ],
        out_specs=[
            pl.BlockSpec((None, B, H), lambda t: (t, 0, 0)),   # h per step
            pl.BlockSpec((B, H), lambda t: (0, 0)),            # final h
            pl.BlockSpec((B, H), lambda t: (0, 0)),            # final c
        ],
        scratch_shapes=[pltpu.VMEM((B, H), jnp.float32),       # h carry
                        pltpu.VMEM((B, H), jnp.float32)],      # c carry
        compiler_params=pltpu.CompilerParams(
            dimension_semantics=("arbitrary",),                # recurrent carry
            vmem_limit_bytes=_vmem_limit_bytes(xs[0], h0, c0, Wx, Wh, b_all),
        ),
        cost_estimate=cost,
    )(xs, h0, c0, Wx, Wh, b_all)
    return h_seq, (h_T, c_T)


# ---------------------------------------------------------------------------
# Parameter init + pure-JAX reference (PyTorch semantics)
# ---------------------------------------------------------------------------

def init_params(key, input_size, hidden_size, dtype=jnp.float32):
    """Deterministic init mirroring torch.nn.Linear default (U(-k, k), k=1/sqrt(fan_in))."""
    fan_in = input_size + hidden_size
    k = 1.0 / (fan_in ** 0.5)
    keys = jax.random.split(key, 8)
    params = {}
    for idx, gate in enumerate(["i", "f", "o", "g"]):
        w = jax.random.uniform(keys[2 * idx], (fan_in, hidden_size),
                               minval=-k, maxval=k, dtype=jnp.float32)
        b = jax.random.uniform(keys[2 * idx + 1], (hidden_size,),
                               minval=-k, maxval=k, dtype=jnp.float32)
        params[f"W_{gate}"] = w.astype(dtype)
        params[f"b_{gate}"] = b.astype(dtype)
    return params


def reference_lstm_cell(x, hidden, params, cell_activation="tanh",
                        hidden_activation="tanh"):
    """Pure-JAX reference matching the PyTorch module semantics."""
    h_prev, c_prev = hidden
    combined = jnp.concatenate([x, h_prev], axis=1)
    i = jax.nn.sigmoid(combined @ params["W_i"] + params["b_i"])
    f = jax.nn.sigmoid(combined @ params["W_f"] + params["b_f"])
    o = jax.nn.sigmoid(combined @ params["W_o"] + params["b_o"])
    g = _activation(cell_activation, combined @ params["W_g"] + params["b_g"])
    c = f * c_prev + i * g
    h = o * _activation(hidden_activation, c)
    return h, c


# ---------------------------------------------------------------------------
# Demo / correctness check
# ---------------------------------------------------------------------------

if __name__ == "__main__":
    B = 8
    INPUT_SIZE = 16
    HIDDEN_SIZE = 32
    T = 6

    key = jax.random.PRNGKey(0)
    kx, kh, kc, kp, ks = jax.random.split(key, 5)

    x = jax.random.normal(kx, (B, INPUT_SIZE), dtype=jnp.float32)
    h_prev = jax.random.normal(kh, (B, HIDDEN_SIZE), dtype=jnp.float32)
    c_prev = jax.random.normal(kc, (B, HIDDEN_SIZE), dtype=jnp.float32)
    params = init_params(kp, INPUT_SIZE, HIDDEN_SIZE)

    # --- single step, tanh ---
    h, c = custom_lstm_cell(x, (h_prev, c_prev), params)
    jax.block_until_ready((h, c))
    h_ref, c_ref = reference_lstm_cell(x, (h_prev, c_prev), params)
    assert jnp.allclose(h, h_ref, atol=1e-5, rtol=1e-5)
    assert jnp.allclose(c, c_ref, atol=1e-5, rtol=1e-5)

    # --- single step, ELU activations ---
    h2, c2 = custom_lstm_cell(x, (h_prev, c_prev), params,
                              cell_activation="elu", hidden_activation="elu")
    jax.block_until_ready((h2, c2))
    h2_ref, c2_ref = reference_lstm_cell(x, (h_prev, c_prev), params,
                                         cell_activation="elu",
                                         hidden_activation="elu")
    assert jnp.allclose(h2, h2_ref, atol=1e-5, rtol=1e-5)
    assert jnp.allclose(c2, c2_ref, atol=1e-5, rtol=1e-5)

    # --- single step, approximate sigmoid (EUP vrcp path), looser tolerance ---
    h3, c3 = custom_lstm_cell(x, (h_prev, c_prev), params, approx_sigmoid=True)
    jax.block_until_ready((h3, c3))
    assert jnp.allclose(h3, h_ref, atol=2e-2, rtol=2e-2)
    assert jnp.allclose(c3, c_ref, atol=2e-2, rtol=2e-2)

    # --- in-kernel time loop vs. lax.scan over the reference cell ---
    xs = jax.random.normal(ks, (T, B, INPUT_SIZE), dtype=jnp.float32)
    h_seq, (h_T, c_T) = custom_lstm_sequence(xs, (h_prev, c_prev), params)
    jax.block_until_ready((h_seq, h_T, c_T))

    def scan_step(carry, xt):
        hh, cc = reference_lstm_cell(xt, carry, params)
        return (hh, cc), hh

    (h_T_ref, c_T_ref), h_seq_ref = jax.lax.scan(scan_step, (h_prev, c_prev), xs)
    assert jnp.allclose(h_seq, h_seq_ref, atol=1e-4, rtol=1e-4)
    assert jnp.allclose(h_T, h_T_ref, atol=1e-4, rtol=1e-4)
    assert jnp.allclose(c_T, c_T_ref, atol=1e-4, rtol=1e-4)

    print("KERNEL_OK")
</pallas_src>

<mosaic_0001>
module attributes {stable_mosaic.version = 11 : i64} {
  func.func @lstm_cell_kernel(%arg0: i32, %arg1: memref<8x16xf32, #tpu.memory_space<vmem>>, %arg2: memref<8x32xf32, #tpu.memory_space<vmem>>, %arg3: memref<16x128xf32, #tpu.memory_space<vmem>>, %arg4: memref<32x128xf32, #tpu.memory_space<vmem>>, %arg5: memref<1x128xf32, #tpu.memory_space<vmem>>, %arg6: memref<8x32xf32, #tpu.memory_space<vmem>>, %arg7: memref<8x32xf32, #tpu.memory_space<vmem>>, %arg8: memref<8x32xf32, #tpu.memory_space<vmem>>) attributes {dimension_semantics = [#tpu.dimension_semantics<parallel>], iteration_bounds = array<i64: 1>, scalar_prefetch = 0 : i64, scratch_operands = 0 : i64, tpu.core_type = #tpu.core_type<tc>, window_params = [{transform_indices = @transform_0, window_bounds = array<i64: 8, 16>}, {transform_indices = @transform_1, window_bounds = array<i64: 8, 32>}, {pipeline_mode = #tpu.pipeline_mode<synchronous>, transform_indices = @transform_2, window_bounds = array<i64: 16, 128>}, {pipeline_mode = #tpu.pipeline_mode<synchronous>, transform_indices = @transform_3, window_bounds = array<i64: 32, 128>}, {pipeline_mode = #tpu.pipeline_mode<synchronous>, transform_indices = @transform_4, window_bounds = array<i64: 1, 128>}, {transform_indices = @transform_5, window_bounds = array<i64: 8, 32>}, {transform_indices = @transform_6, window_bounds = array<i64: 8, 32>}, {transform_indices = @transform_7, window_bounds = array<i64: 8, 32>}]} {
    %c0 = arith.constant 0 : index
    %c0_0 = arith.constant 0 : index
    %0 = vector.load %arg1[%c0, %c0_0] : memref<8x16xf32, #tpu.memory_space<vmem>>, vector<8x16xf32>
    %c0_1 = arith.constant 0 : index
    %c0_2 = arith.constant 0 : index
    %1 = vector.load %arg2[%c0_1, %c0_2] : memref<8x32xf32, #tpu.memory_space<vmem>>, vector<8x32xf32>
    %c0_3 = arith.constant 0 : index
    %c0_4 = arith.constant 0 : index
    %2 = vector.load %arg6[%c0_3, %c0_4] : memref<8x32xf32, #tpu.memory_space<vmem>>, vector<8x32xf32>
    %c0_5 = arith.constant 0 : index
    %c0_6 = arith.constant 0 : index
    %3 = vector.load %arg3[%c0_5, %c0_6] : memref<16x128xf32, #tpu.memory_space<vmem>>, vector<16x128xf32>
    %c0_7 = arith.constant 0 : index
    %c0_8 = arith.constant 0 : index
    %4 = vector.load %arg4[%c0_7, %c0_8] : memref<32x128xf32, #tpu.memory_space<vmem>>, vector<32x128xf32>
    %c0_9 = arith.constant 0 : index
    %c0_10 = arith.constant 0 : index
    %5 = vector.load %arg5[%c0_9, %c0_10] : memref<1x128xf32, #tpu.memory_space<vmem>>, vector<1x128xf32>
    %cst = arith.constant dense<0.000000e+00> : vector<8x128xf32>
    %6 = tpu.matmul %0, %3, %cst {dimension_numbers = #tpu.dot_dimension_numbers<[1], [0], [0], [1], [0, 0, 1, 1], [], []>} : vector<8x16xf32>, vector<16x128xf32>, vector<8x128xf32> -> vector<8x128xf32>
    %cst_11 = arith.constant dense<0.000000e+00> : vector<8x128xf32>
    %7 = tpu.matmul %1, %4, %cst_11 {dimension_numbers = #tpu.dot_dimension_numbers<[1], [0], [0], [1], [0, 0, 1, 1], [], []>} : vector<8x32xf32>, vector<32x128xf32>, vector<8x128xf32> -> vector<8x128xf32>
    %8 = arith.addf %6, %7 : vector<8x128xf32>
    %9 = vector.broadcast %5 : vector<1x128xf32> to vector<8x128xf32>
    %10 = arith.addf %8, %9 : vector<8x128xf32>
    %11 = vector.extract_strided_slice %10 {offsets = [0, 0], sizes = [8, 32], strides = [1, 1]} : vector<8x128xf32> to vector<8x32xf32>
    %cst_12 = arith.constant 0.000000e+00 : f32
    %12 = vector.broadcast %cst_12 : f32 to vector<8x32xf32>
    %13 = arith.subf %12, %11 : vector<8x32xf32>
    %14 = math.exp %13 : vector<8x32xf32>
    %cst_13 = arith.constant 1.000000e+00 : f32
    %15 = vector.broadcast %cst_13 : f32 to vector<8x32xf32>
    %16 = arith.addf %15, %14 : vector<8x32xf32>
    %17 = tpu.reciprocal %16 : vector<8x32xf32> -> vector<8x32xf32>
    %18 = vector.extract_strided_slice %10 {offsets = [0, 32], sizes = [8, 32], strides = [1, 1]} : vector<8x128xf32> to vector<8x32xf32>
    %cst_14 = arith.constant 0.000000e+00 : f32
    %19 = vector.broadcast %cst_14 : f32 to vector<8x32xf32>
    %20 = arith.subf %19, %18 : vector<8x32xf32>
    %21 = math.exp %20 : vector<8x32xf32>
    %cst_15 = arith.constant 1.000000e+00 : f32
    %22 = vector.broadcast %cst_15 : f32 to vector<8x32xf32>
    %23 = arith.addf %22, %21 : vector<8x32xf32>
    %24 = tpu.reciprocal %23 : vector<8x32xf32> -> vector<8x32xf32>
    %25 = vector.extract_strided_slice %10 {offsets = [0, 64], sizes = [8, 32], strides = [1, 1]} : vector<8x128xf32> to vector<8x32xf32>
    %cst_16 = arith.constant 0.000000e+00 : f32
    %26 = vector.broadcast %cst_16 : f32 to vector<8x32xf32>
    %27 = arith.subf %26, %25 : vector<8x32xf32>
    %28 = math.exp %27 : vector<8x32xf32>
    %cst_17 = arith.constant 1.000000e+00 : f32
    %29 = vector.broadcast %cst_17 : f32 to vector<8x32xf32>
    %30 = arith.addf %29, %28 : vector<8x32xf32>
    %31 = tpu.reciprocal %30 : vector<8x32xf32> -> vector<8x32xf32>
    %32 = vector.extract_strided_slice %10 {offsets = [0, 96], sizes = [8, 32], strides = [1, 1]} : vector<8x128xf32> to vector<8x32xf32>
    %33 = math.tanh %32 : vector<8x32xf32>
    %34 = arith.mulf %24, %2 : vector<8x32xf32>
    %35 = arith.mulf %17, %33 : vector<8x32xf32>
    %36 = arith.addf %34, %35 : vector<8x32xf32>
    %37 = math.tanh %36 : vector<8x32xf32>
    %38 = arith.mulf %31, %37 : vector<8x32xf32>
    %c0_18 = arith.constant 0 : index
    %c0_19 = arith.constant 0 : index
    %39 = vector.load %arg7[%c0_18, %c0_19] : memref<8x32xf32, #tpu.memory_space<vmem>>, vector<8x32xf32>
    tpu.vector_store %arg7[%c0_18, %c0_19], %38 {strides = array<i32>} : memref<8x32xf32, #tpu.memory_space<vmem>>, vector<8x32xf32>,
    %c0_20 = arith.constant 0 : index
    %c0_21 = arith.constant 0 : index
    %40 = vector.load %arg8[%c0_20, %c0_21] : memref<8x32xf32, #tpu.memory_space<vmem>>, vector<8x32xf32>
    tpu.vector_store %arg8[%c0_20, %c0_21], %36 {strides = array<i32>} : memref<8x32xf32, #tpu.memory_space<vmem>>, vector<8x32xf32>,
    return
  }
  func.func @transform_0(%arg0: i32) -> (i32, i32) {
    %c0_i32 = arith.constant 0 : i32
    %c0_i32_0 = arith.constant 0 : i32
    return %arg0, %c0_i32 : i32, i32
  }
  func.func @transform_1(%arg0: i32) -> (i32, i32) {
    %c0_i32 = arith.constant 0 : i32
    %c0_i32_0 = arith.constant 0 : i32
    return %arg0, %c0_i32 : i32, i32
  }
  func.func @transform_2(%arg0: i32) -> (i32, i32) {
    %c0_i32 = arith.constant 0 : i32
    %c0_i32_0 = arith.constant 0 : i32
    %c0_i32_1 = arith.constant 0 : i32
    return %c0_i32, %c0_i32_0 : i32, i32
  }
  func.func @transform_3(%arg0: i32) -> (i32, i32) {
    %c0_i32 = arith.constant 0 : i32
    %c0_i32_0 = arith.constant 0 : i32
    %c0_i32_1 = arith.constant 0 : i32
    return %c0_i32, %c0_i32_0 : i32, i32
  }
  func.func @transform_4(%arg0: i32) -> (i32, i32) {
    %c0_i32 = arith.constant 0 : i32
    %c0_i32_0 = arith.constant 0 : i32
    %c0_i32_1 = arith.constant 0 : i32
    return %c0_i32, %c0_i32_0 : i32, i32
  }
  func.func @transform_5(%arg0: i32) -> (i32, i32) {
    %c0_i32 = arith.constant 0 : i32
    %c0_i32_0 = arith.constant 0 : i32
    return %arg0, %c0_i32 : i32, i32
  }
  func.func @transform_6(%arg0: i32) -> (i32, i32) {
    %c0_i32 = arith.constant 0 : i32
    %c0_i32_0 = arith.constant 0 : i32
    return %arg0, %c0_i32 : i32, i32
  }
  func.func @transform_7(%arg0: i32) -> (i32, i32) {
    %c0_i32 = arith.constant 0 : i32
    %c0_i32_0 = arith.constant 0 : i32
    return %arg0, %c0_i32 : i32, i32
  }
}

</mosaic_0001>

<llo_original>
// kernel: tpu_custom_call.1
$region0: #{tpu_custom_call.1}
  #allocation0 [shape = 'u32[]', space=smem, size = 0x4, offset = 0x4, fixed_abs, tag = 'smem constant byte address 0x4 - core index']
  #allocation1 [shape = 'u32[144,128]{1,0:T(1,128)}', space=vmem, size = 0x12000, scoped, tag = 'internal scratch']
  %s0 = inlined_call_operand.hbm [shape: f32[8,16], index: 0, kind: input, shape index: {}]
  %s1 = inlined_call_operand.hbm [shape: f32[8,32], index: 1, kind: input, shape index: {}]
  %s2 = inlined_call_operand.hbm [shape: f32[16,128], index: 2, kind: input, shape index: {}]
  %s3 = inlined_call_operand.hbm [shape: f32[32,128], index: 3, kind: input, shape index: {}]
  %s4 = inlined_call_operand.vmem [shape: f32[1,128], index: 4, kind: input, shape index: {}]
  %s5 = inlined_call_operand.vmem [shape: f32[8,32], index: 5, kind: input, shape index: {}]
  %s6 = inlined_call_operand.hbm [shape: f32[8,32], index: 6, kind: output, shape index: {0}]
  %s7 = inlined_call_operand.hbm [shape: f32[8,32], index: 7, kind: output, shape index: {1}]
  %8 = xla_tuple %s6, %s7
  %s9 = sld [smem:[#allocation0]]
  $region58: #{tpu_custom_call.1} parent=0
    _
  %s11 = ssub.s32 1, %s9
  %s12 = scalar_select 0, %s11, %s9
  $region1: #{tpu_custom_call.1} parent=0
    #allocation2 [shape = 'u8[4096]{0}', space=vmem, size = 0x1000, scoped, tag = 'input window, operand 0, single buffered']
    #allocation3 [shape = 's32[1]{0}', space=sflag, size = 0x4, scoped, tag = 'scoped memory for tpu_custom_call.1']
    #allocation4 [shape = 's32[1]{0}', space=sflag, size = 0x4, scoped, tag = 'scoped memory for tpu_custom_call.1']
    #allocation5 [shape = 'u8[4096]{0}', space=vmem, size = 0x1000, scoped, tag = 'input window, operand 1, single buffered']
    #allocation6 [shape = 's32[1]{0}', space=sflag, size = 0x4, scoped, tag = 'scoped memory for tpu_custom_call.1']
    #allocation7 [shape = 'u8[8192]{0}', space=vmem, size = 0x2000, scoped, tag = 'input window, operand 2, single buffered']
    #allocation8 [shape = 'u8[16384]{0}', space=vmem, size = 0x4000, scoped, tag = 'input window, operand 3, single buffered']
    #allocation9 [shape = 's32[1]{0}', space=sflag, size = 0x4, scoped, tag = 'scoped memory for tpu_custom_call.1']
    #allocation10 [shape = 'u8[4096]{0}', space=vmem, size = 0x1000, scoped, tag = 'output window, operand 0, single buffered']
    #allocation11 [shape = 'u8[4096]{0}', space=vmem, size = 0x1000, scoped, tag = 'output window, operand 1, single buffered']
    #allocation12 [shape = 's32[1]{0}', space=sflag, size = 0x4, scoped, tag = 'scoped memory for tpu_custom_call.1']
    %13 = vsyncpa [#allocation3], 0
    %14 = vsyncpa [#allocation6], 0
    %15 = vsyncpa [#allocation9], 0
    %16 = vsyncpa [#allocation4], 0
    %17 = vsyncpa [#allocation12], 0
    // Predicated region
    $region2: #{tpu_custom_call.1} parent=1 // pred_check
      _
    $region3: #{tpu_custom_call.1} parent=1 // pred_check_branch
      %19 = sbr.rel (0) target = $region5
    $region4: #{tpu_custom_call.1} parent=1 // pred_region
      %s21 = ssub.s32 128, 128
      %22 = vsyncadd [#allocation3], %s21
      %s24 = sshll.u32 [#allocation2], 4
      %s25 = int_to_ptr.vmem [resolvable:$true] %s24
      %27 = dma.hbm_to_vmem [thread:$0]  %s0, 128, %s25, [#allocation3]
    $region5: #{tpu_custom_call.1} parent=1 // pred_fallthru
      _
    // Predicated region
    $region6: #{tpu_custom_call.1} parent=1 // pred_check
      _
    $region7: #{tpu_custom_call.1} parent=1 // pred_check_branch
      %29 = sbr.rel (0) target = $region9
    $region8: #{tpu_custom_call.1} parent=1 // pred_region
      %s31 = ssub.s32 128, 128
      %32 = vsyncadd [#allocation6], %s31
      %s34 = sshll.u32 [#allocation5], 4
      %s35 = int_to_ptr.vmem [resolvable:$true] %s34
      %37 = dma.hbm_to_vmem [thread:$0]  %s1, 128, %s35, [#allocation6]
    $region9: #{tpu_custom_call.1} parent=1 // pred_fallthru
      _
    // Predicated region
    $region10: #{tpu_custom_call.1} parent=1 // pred_check
      _
    $region11: #{tpu_custom_call.1} parent=1 // pred_check_branch
      %39 = sbr.rel (0) target = $region13
    $region12: #{tpu_custom_call.1} parent=1 // pred_region
      %s41 = ssub.s32 256, 256
      %42 = vsyncadd [#allocation6], %s41
      %s43 = sshll.u32 [#allocation7], 4
      %s44 = int_to_ptr.vmem [resolvable:$true] %s43
      %49 = dma.hbm_to_vmem [thread:$0]  %s2, 256, %s44, [#allocation6], 128, 128, 8
    $region13: #{tpu_custom_call.1} parent=1 // pred_fallthru
      _
    // Predicated region
    $region14: #{tpu_custom_call.1} parent=1 // pred_check
      _
    $region15: #{tpu_custom_call.1} parent=1 // pred_check_branch
      %51 = sbr.rel (0) target = $region17
    $region16: #{tpu_custom_call.1} parent=1 // pred_region
      %s53 = ssub.s32 512, 512
      %54 = vsyncadd [#allocation9], %s53
      %s55 = sshll.u32 [#allocation8], 4
      %s56 = int_to_ptr.vmem [resolvable:$true] %s55
      %61 = dma.hbm_to_vmem [thread:$0]  %s3, 512, %s56, [#allocation9], 128, 128, 8
    $region17: #{tpu_custom_call.1} parent=1 // pred_fallthru
      _
    // Predicated region
    $region18: #{tpu_custom_call.1} parent=1 // pred_check
      _
    $region19: #{tpu_custom_call.1} parent=1 // pred_check_branch
      %63 = sbr.rel (0) target = $region21
    $region20: #{tpu_custom_call.1} parent=1 // pred_region
      _
    $region21: #{tpu_custom_call.1} parent=1 // pred_fallthru
      _
    // Predicated region
    $region22: #{tpu_custom_call.1} parent=1 // pred_check
      _
    $region23: #{tpu_custom_call.1} parent=1 // pred_check_branch
      %65 = sbr.rel (0) target = $region25
    $region24: #{tpu_custom_call.1} parent=1 // pred_region
      _
    $region25: #{tpu_custom_call.1} parent=1 // pred_fallthru
      _
    // Predicated region
    $region26: #{tpu_custom_call.1} parent=1 // pred_check
      _
    $region27: #{tpu_custom_call.1} parent=1 // pred_check_branch
      %67 = sbr.rel (0) target = $region29
    $region28: #{tpu_custom_call.1} parent=1 // pred_region
      %68 = dma.done [#allocation3], 128
    $region29: #{tpu_custom_call.1} parent=1 // pred_fallthru
      _
    // Predicated region
    $region30: #{tpu_custom_call.1} parent=1 // pred_check
      _
    $region31: #{tpu_custom_call.1} parent=1 // pred_check_branch
      %70 = sbr.rel (0) target = $region33
    $region32: #{tpu_custom_call.1} parent=1 // pred_region
      %71 = dma.done [#allocation6], 128
    $region33: #{tpu_custom_call.1} parent=1 // pred_fallthru
      _
    // Predicated region
    $region34: #{tpu_custom_call.1} parent=1 // pred_check
      _
    $region35: #{tpu_custom_call.1} parent=1 // pred_check_branch
      %73 = sbr.rel (0) target = $region37
    $region36: #{tpu_custom_call.1} parent=1 // pred_region
      %74 = dma.done [#allocation6], 256
    $region37: #{tpu_custom_call.1} parent=1 // pred_fallthru
      _
    // Predicated region
    $region38: #{tpu_custom_call.1} parent=1 // pred_check
      _
    $region39: #{tpu_custom_call.1} parent=1 // pred_check_branch
      %76 = sbr.rel (0) target = $region41
    $region40: #{tpu_custom_call.1} parent=1 // pred_region
      %77 = dma.done [#allocation9], 512
    $region41: #{tpu_custom_call.1} parent=1 // pred_fallthru
      _
    %v78 = vld [vmem:[#allocation2] sm:$0xff]
    %v79 = vld [vmem:[#allocation5] sm:$0xff]
    %v80 = vld [vmem:[%s5] sm:$0xff]
    %v81 = vld [vmem:[#allocation7] sm:$0xff]
    %v82 = vld [vmem:[#allocation7 + $0x8] sm:$0xff]
    %v83 = vld [vmem:[#allocation8] sm:$0xff]
    %v84 = vld [vmem:[#allocation8 + $0x8] sm:$0xff]
    %v85 = vld [vmem:[#allocation8 + $0x10] sm:$0xff]
    %v86 = vld [vmem:[#allocation8 + $0x18] sm:$0xff]
    %v87 = vld [vmem:[%s4] sm:$0x1]
    %vm88 = vcmask 261120
    %v90 = vsel %vm88, %v79, 0
    %92 = vmatprep.subr.mxu0 0.0
    %93 = vmatpush1.msra.mxu0 %v83
    %94 = vmatprep.subr.mxu0 0.0
    %95 = vmatpush1.msra.mxu0 %v84
    %96 = vmatprep.subr.mxu0 0.0
    %97 = vmatpush1.msra.mxu0 %v85
    %98 = vmatprep.subr.mxu0 0.0
    %99 = vmatpush1.msra.mxu0 %v86
    %100 = vmatprep.subr.mxu0 0.0
    %101 = vmatpush1.msra.mxu0 0.0
    %102 = vmatprep.subr.mxu0 0.0
    %103 = vmatpush1.msra.mxu0 0.0
    %104 = vmatprep.subr.mxu0 0.0
    %105 = vmatpush1.msra.mxu0 0.0
    %106 = vmatprep.subr.mxu0 0.0
    %107 = vmatpush1.msra.mxu0 0.0
    %108 = vmatprep.subr.mxu0 0.0
    %109 = vmatpush1.msra.mxu0 0.0
    %110 = vmatprep.subr.mxu0 0.0
    %111 = vmatpush1.msra.mxu0 0.0
    %112 = vmatprep.subr.mxu0 0.0
    %113 = vmatpush1.msra.mxu0 0.0
    %114 = vmatprep.subr.mxu0 0.0
    %115 = vmatpush1.msra.mxu0 0.0
    %116 = vmatprep.subr.mxu0 0.0
    %117 = vmatpush1.msra.mxu0 0.0
    %118 = vmatprep.subr.mxu0 0.0
    %119 = vmatpush1.msra.mxu0 0.0
    %120 = vmatprep.subr.mxu0 0.0
    %121 = vmatpush1.msra.mxu0 0.0
    %122 = vmatprep.subr.mxu0 0.0
    %123 = vmatpush1.msra.mxu0 0.0
    %124 = vmatprep.subr.mxu0 0.0
    %125 = vmatpush1.msra.mxu0 0.0
    %126 = vmatprep.subr.mxu0 0.0
    %127 = vmatpush1.msra.mxu0 0.0
    %128 = vmatprep.subr.mxu0 0.0
    %129 = vmatpush1.msra.mxu0 0.0
    %130 = vmatprep.subr.mxu0 0.0
    %131 = vmatpush1.msra.mxu0 0.0
    %132 = vmatprep.subr.mxu0 0.0
    %133 = vmatpush1.msra.mxu0 0.0
    %134 = vmatprep.subr.mxu0 0.0
    %135 = vmatpush1.msra.mxu0 0.0
    %136 = vmatprep.subr.mxu0 0.0
    %137 = vmatpush1.msra.mxu0 0.0
    %138 = vmatprep.subr.mxu0 0.0
    %139 = vmatpush1.msra.mxu0 0.0
    %140 = vmatprep.subr.mxu0 0.0
    %141 = vmatpush1.msra.mxu0 0.0
    %142 = vmatprep.subr.mxu0 0.0
    %143 = vmatpush1.msra.mxu0 0.0
    %144 = vmatprep.subr.mxu0 0.0
    %145 = vmatpush1.msra.mxu0 0.0
    %146 = vmatprep.subr.mxu0 0.0
    %147 = vmatpush1.msra.mxu0 0.0
    %148 = vmatprep.subr.mxu0 0.0
    %149 = vmatpush1.msra.mxu0 0.0
    %150 = vmatprep.subr.mxu0 0.0
    %151 = vmatpush1.msra.mxu0 0.0
    %152 = vmatprep.subr.mxu0 0.0
    %153 = vmatpush1.msra.mxu0 0.0
    %154 = vmatprep.subr.mxu0 0.0
    %155 = vmatpush1.msra.mxu0 0.0
    %156 = vmatprep.mubr.f32.mxu0 0.0
    %157 = vmatmul.mubr.f32.gmra.mrb[0].mxu0 %v90
    %v158 = vpop.f32.mrb[0].mxu0
    %v159 = vadd.f32 0.0, %v158
    %v160 = vpop.f32.mrb[0].mxu0
    %161 = vdwg.mxu0
    %vm162 = vcmask 130048
    %v164 = vsel %vm162, %v78, 0
    %166 = vmatprep.subr.mxu0 0.0
    %167 = vmatpush1.msra.mxu0 %v81
    %168 = vmatprep.subr.mxu0 0.0
    %169 = vmatpush1.msra.mxu0 %v82
    %170 = vmatprep.subr.mxu0 0.0
    %171 = vmatpush1.msra.mxu0 0.0
    %172 = vmatprep.subr.mxu0 0.0
    %173 = vmatpush1.msra.mxu0 0.0
    %174 = vmatprep.subr.mxu0 0.0
    %175 = vmatpush1.msra.mxu0 0.0
    %176 = vmatprep.subr.mxu0 0.0
    %177 = vmatpush1.msra.mxu0 0.0
    %178 = vmatprep.subr.mxu0 0.0
    %179 = vmatpush1.msra.mxu0 0.0
    %180 = vmatprep.subr.mxu0 0.0
    %181 = vmatpush1.msra.mxu0 0.0
    %182 = vmatprep.subr.mxu0 0.0
    %183 = vmatpush1.msra.mxu0 0.0
    %184 = vmatprep.subr.mxu0 0.0
    %185 = vmatpush1.msra.mxu0 0.0
    %186 = vmatprep.subr.mxu0 0.0
    %187 = vmatpush1.msra.mxu0 0.0
    %188 = vmatprep.subr.mxu0 0.0
    %189 = vmatpush1.msra.mxu0 0.0
    %190 = vmatprep.subr.mxu0 0.0
    %191 = vmatpush1.msra.mxu0 0.0
    %192 = vmatprep.subr.mxu0 0.0
    %193 = vmatpush1.msra.mxu0 0.0
    %194 = vmatprep.subr.mxu0 0.0
    %195 = vmatpush1.msra.mxu0 0.0
    %196 = vmatprep.subr.mxu0 0.0
    %197 = vmatpush1.msra.mxu0 0.0
    %198 = vmatprep.subr.mxu0 0.0
    %199 = vmatpush1.msra.mxu0 0.0
    %200 = vmatprep.subr.mxu0 0.0
    %201 = vmatpush1.msra.mxu0 0.0
    %202 = vmatprep.subr.mxu0 0.0
    %203 = vmatpush1.msra.mxu0 0.0
    %204 = vmatprep.subr.mxu0 0.0
    %205 = vmatpush1.msra.mxu0 0.0
    %206 = vmatprep.subr.mxu0 0.0
    %207 = vmatpush1.msra.mxu0 0.0
    %208 = vmatprep.subr.mxu0 0.0
    %209 = vmatpush1.msra.mxu0 0.0
    %210 = vmatprep.subr.mxu0 0.0
    %211 = vmatpush1.msra.mxu0 0.0
    %212 = vmatprep.subr.mxu0 0.0
    %213 = vmatpush1.msra.mxu0 0.0
    %214 = vmatprep.subr.mxu0 0.0
    %215 = vmatpush1.msra.mxu0 0.0
    %216 = vmatprep.subr.mxu0 0.0
    %217 = vmatpush1.msra.mxu0 0.0
    %218 = vmatprep.subr.mxu0 0.0
    %219 = vmatpush1.msra.mxu0 0.0
    %220 = vmatprep.subr.mxu0 0.0
    %221 = vmatpush1.msra.mxu0 0.0
    %222 = vmatprep.subr.mxu0 0.0
    %223 = vmatpush1.msra.mxu0 0.0
    %224 = vmatprep.subr.mxu0 0.0
    %225 = vmatpush1.msra.mxu0 0.0
    %226 = vmatprep.subr.mxu0 0.0
    %227 = vmatpush1.msra.mxu0 0.0
    %228 = vmatprep.subr.mxu0 0.0
    %229 = vmatpush1.msra.mxu0 0.0
    %230 = vmatprep.mubr.f32.mxu0 0.0
    %231 = vmatmul.mubr.f32.gmra.mrb[0].mxu0 %v164
    %v232 = vpop.f32.mrb[0].mxu0
    %v233 = vadd.f32 %v159, %v232
    %v234 = vpop.f32.mrb[0].mxu0
    %235 = vdwg.mxu0
    %v237 = vlaneseq
    %v238 = vshrl.u32 %v237, 7
    %v239 = vsub.s32 0, %v238
    %v240 = vrot.slane %v87, %v239
    %v242 = vadd.f32 %v233, %v240
    %v243 = vsub.f32 0.0, %v242
    %v244 = vmul.f32 %v243, 1.442695
    %v245 = vpow.pop %v244
    %v246 = vadd.f32 %v245, 1.0
    %v247 = vrcp.pop %v246
    %v248 = vtanh.pop %v242
    %250 = vrot.lane.b32.xlu0 %v80, 32
    %v251 = vpop.permute.xlu0 %250
    %v253 = vmul.f32 %v247, %v251
    %255 = vrot.lane.b32.xlu0 %v248, 32
    %v256 = vpop.permute.xlu0 %255
    %v258 = vmul.f32 %v247, %v256
    %260 = vrot.lane.b32.xlu0 %v258, 32
    %v261 = vpop.permute.xlu0 %260
    %v263 = vadd.f32 %v253, %v261
    %v264 = vtanh.pop %v263
    %266 = vrot.lane.b32.xlu0 %v264, 32
    %v267 = vpop.permute.xlu0 %266
    %v269 = vmul.f32 %v247, %v267
    %271 = vrot.lane.b32.xlu0 %v269, 64
    %v272 = vpop.permute.xlu0 %271
    %274 = vst.msk [vmem:[#allocation10] sm:$0xff] %vm88, %v272
    %276 = vrot.lane.b32.xlu0 %v263, 96
    %v277 = vpop.permute.xlu0 %276
    %279 = vst.msk [vmem:[#allocation11] sm:$0xff] %vm88, %v277
    // Predicated region
    $region42: #{tpu_custom_call.1} parent=1 // pred_check
      _
    $region43: #{tpu_custom_call.1} parent=1 // pred_check_branch
      %281 = sbr.rel (0) target = $region45
    $region44: #{tpu_custom_call.1} parent=1 // pred_region
      %s283 = ssub.s32 128, 128
      %284 = vsyncadd [#allocation4], %s283
      %s286 = sshll.u32 [#allocation10], 4
      %s287 = int_to_ptr.vmem [resolvable:$true] %s286
      %289 = dma.vmem_to_hbm [thread:$0]  %s287, 128, %s6, [#allocation4]
    $region45: #{tpu_custom_call.1} parent=1 // pred_fallthru
      _
    // Predicated region
    $region46: #{tpu_custom_call.1} parent=1 // pred_check
      _
    $region47: #{tpu_custom_call.1} parent=1 // pred_check_branch
      %291 = sbr.rel (0) target = $region49
    $region48: #{tpu_custom_call.1} parent=1 // pred_region
      %s293 = ssub.s32 128, 128
      %294 = vsyncadd [#allocation12], %s293
      %s296 = sshll.u32 [#allocation11], 4
      %s297 = int_to_ptr.vmem [resolvable:$true] %s296
      %299 = dma.vmem_to_hbm [thread:$0]  %s297, 128, %s7, [#allocation12]
    $region49: #{tpu_custom_call.1} parent=1 // pred_fallthru
      _
    // Predicated region
    $region50: #{tpu_custom_call.1} parent=1 // pred_check
      _
    $region51: #{tpu_custom_call.1} parent=1 // pred_check_branch
      %301 = sbr.rel (0) target = $region53
    $region52: #{tpu_custom_call.1} parent=1 // pred_region
      %302 = dma.done [#allocation4], 128
    $region53: #{tpu_custom_call.1} parent=1 // pred_fallthru
      _
    // Predicated region
    $region54: #{tpu_custom_call.1} parent=1 // pred_check
      _
    $region55: #{tpu_custom_call.1} parent=1 // pred_check_branch
      %304 = sbr.rel (0) target = $region57
    $region56: #{tpu_custom_call.1} parent=1 // pred_region
      %305 = dma.done [#allocation12], 128
    $region57: #{tpu_custom_call.1} parent=1 // pred_fallthru
      _
    %306 = vsyncpa [#allocation3], 1
    %307 = vsyncpa [#allocation6], 1
    %308 = vsyncpa [#allocation9], 1
    %309 = vsyncpa [#allocation4], 1
    %310 = vsyncpa [#allocation12], 1

</llo_original>
